<compile_context>
chip_gen: v6e
topology: v6e:2x2x1
jax: 0.10.0
libtpu: 0.0.40
codegen_flags: <defaults>
</compile_context>

<pallas_src>
import functools

import jax
import jax.numpy as jnp
from jax import lax
from jax.experimental import pallas as pl
from jax.experimental.pallas import tpu as pltpu


def _round_up(v, m):
    return ((v + m - 1) // m) * m


# ----------------------------------------------------------------------------
# Fused kernel: out = gamma * (r - mean) / sqrt(var + eps) + beta,  r = x + y
# ----------------------------------------------------------------------------
def _residual_layernorm_kernel(x_ref, y_ref, gamma_ref, beta_ref, o_ref, *,
                               eps, true_d):
    # Single streaming pass: s1 = sum(r), s2 = sum(r*r);
    # mean = s1/D, var = s2/D - mean^2 (biased, matches torch unbiased=False).
    #
    # NOTE (remainder blocks): when M % tm != 0 the padded rows of the last
    # block hold garbage, but stats are per-row and partial output blocks are
    # mask-stored by the BlockSpec pipeline, so nothing leaks.  Do not replace
    # the store path with manual DMA / pltpu.store without re-adding masking.
    x = x_ref[...].astype(jnp.float32)            # (tm, Dp)
    y = y_ref[...].astype(jnp.float32)            # (tm, Dp)  sublayer output
    r = x + y                                     # residual (dropout upstream)

    inv_d = jnp.float32(1.0 / true_d)             # divide by TRUE d_model
    s1 = jnp.sum(r, axis=-1, keepdims=True)       # padded lanes are exactly 0
    s2 = jnp.sum(r * r, axis=-1, keepdims=True)
    mean = s1 * inv_d
    var = jnp.maximum(s2 * inv_d - mean * mean, 0.0)
    inv_std = lax.rsqrt(var + eps)                # EUP slot

    gamma = gamma_ref[...]                        # (1, Dp), pre-cast f32, 0 in pads
    beta = beta_ref[...]                          # (1, Dp)
    out = (r - mean) * (gamma * inv_std) + beta   # padded lanes -> exact 0
    o_ref[...] = out.astype(o_ref.dtype)


def _pick_tile_m(M, D_pad, itemsize, target_block_bytes=4 << 20):
    """Rows per grid step.

    ~4 MiB per input block amortizes the ~0.35 us per-grid-step overhead even
    at v7x HBM bandwidth, while 3 tiled arrays x 2 pipeline buffers x 4 MiB
    plus f32 temporaries stays well under the 48 MiB VMEM limit we request
    (v7x physical VMEM is 64 MiB).  Dtype-aware: bf16 inputs get 2x the rows.
    """
    tm = target_block_bytes // max(1, D_pad * itemsize)
    tm = max(8, min(512, tm))
    tm = (tm // 8) * 8                            # keep (8,128) sublane alignment
    if M <= tm:
        return M                                  # full-dim block is always legal
    return tm


def residual_layernorm(x, sublayer_out, gamma, beta, *, eps=1e-5):
    """Fused (x + sublayer_out) -> LayerNorm, tiled over rows.

    x, sublayer_out: (..., D);  gamma, beta: (D,).
    """
    orig_shape = x.shape
    D = orig_shape[-1]
    M = x.size // D
    x2 = x.reshape(M, D)
    y2 = sublayer_out.reshape(M, D)
    g = gamma.astype(jnp.float32).reshape(1, D)   # pre-cast once, kept resident
    b = beta.astype(jnp.float32).reshape(1, D)

    # Lane-dense store path: pad the feature dim to a multiple of 128.  Pads
    # are zeros and gamma/beta pads are zero while the kernel divides by the
    # true D, so padded lanes produce exact zeros and are sliced off below.
    D_pad = _round_up(D, 128)
    if D_pad != D:
        pad = ((0, 0), (0, D_pad - D))
        x2 = jnp.pad(x2, pad)
        y2 = jnp.pad(y2, pad)
        g = jnp.pad(g, pad)
        b = jnp.pad(b, pad)

    tm = _pick_tile_m(M, D_pad, x.dtype.itemsize)
    grid = (pl.cdiv(M, tm),)

    kern = functools.partial(_residual_layernorm_kernel, eps=eps, true_d=D)
    out = pl.pallas_call(
        kern,
        out_shape=jax.ShapeDtypeStruct((M, D_pad), x.dtype),
        grid_spec=pltpu.PrefetchScalarGridSpec(
            num_scalar_prefetch=0,
            grid=grid,
            in_specs=[
                pl.BlockSpec((tm, D_pad), lambda i: (i, 0)),   # x rows
                pl.BlockSpec((tm, D_pad), lambda i: (i, 0)),   # sublayer(x) rows
                pl.BlockSpec((1, D_pad), lambda i: (0, 0)),    # gamma (resident)
                pl.BlockSpec((1, D_pad), lambda i: (0, 0)),    # beta  (resident)
            ],
            out_specs=pl.BlockSpec((tm, D_pad), lambda i: (i, 0)),
        ),
        compiler_params=pltpu.CompilerParams(
            # Row axis is embarrassingly parallel: enables pipelining and
            # megacore / dual-TC sharding on chips that support it (v7x).
            dimension_semantics=("parallel",),
            # Sized for v7x's 64 MiB physical VMEM; also valid on v5e/v6e.
            vmem_limit_bytes=48 * 1024 * 1024,
        ),
    )(x2, y2, g, b)

    if D_pad != D:
        out = out[:, :D]
    return out.reshape(orig_shape)


# ----------------------------------------------------------------------------
# ResidualConnection.forward equivalent
# ----------------------------------------------------------------------------
def residual_connection(x, sublayer, gamma, beta, *, dropout_rate=0.0,
                        training=False, rng_key=None, eps=1e-5):
    """LayerNorm(x + Dropout(sublayer(x)))  (post-norm, matches the module).

    Eval mode: dropout is identity (deterministic).  Training mode: inverted
    dropout applied to the sublayer output with jax.random before the fused
    kernel (same scaling as nn.Dropout; RNG stream differs from torch).
    """
    y = sublayer(x)                               # arbitrary sublayer, plain JAX
    if training and dropout_rate > 0.0:
        if rng_key is None:
            rng_key = jax.random.PRNGKey(0)
        keep = jax.random.bernoulli(rng_key, 1.0 - dropout_rate, y.shape)
        y = jnp.where(keep, y / (1.0 - dropout_rate), 0.0).astype(y.dtype)
    return residual_layernorm(x, y, gamma, beta, eps=eps)


# ----------------------------------------------------------------------------
# Pure-JAX reference for validation (matches torch semantics: biased variance)
# ----------------------------------------------------------------------------
def _reference(x, y, gamma, beta, eps=1e-5):
    r = x + y
    mean = jnp.mean(r, axis=-1, keepdims=True)
    var = jnp.mean((r - mean) ** 2, axis=-1, keepdims=True)
    return gamma * (r - mean) / jnp.sqrt(var + eps) + beta


if __name__ == "__main__":
    batch, seq, d_model = 2, 8, 32

    key = jax.random.PRNGKey(0)
    kx, kw, kb, kg, kbe, kd = jax.random.split(key, 6)

    x = jax.random.normal(kx, (batch, seq, d_model), dtype=jnp.float32)

    # Example sublayer (stands in for MHA / feed-forward): a simple linear map.
    W = 0.1 * jax.random.normal(kw, (d_model, d_model), dtype=jnp.float32)
    bias = 0.1 * jax.random.normal(kb, (d_model,), dtype=jnp.float32)
    sublayer = lambda t: t @ W + bias

    # Learnable LayerNorm params (init is ones/zeros; perturb to exercise them).
    gamma = jnp.ones((d_model,), jnp.float32) + 0.1 * jax.random.normal(
        kg, (d_model,), dtype=jnp.float32)
    beta = 0.1 * jax.random.normal(kbe, (d_model,), dtype=jnp.float32)

    # Eval mode (dropout = identity): verify against the pure-JAX reference.
    out = residual_connection(x, sublayer, gamma, beta,
                              dropout_rate=0.1, training=False)
    out = jax.block_until_ready(out)
    ref = _reference(x, sublayer(x), gamma, beta)
    assert out.shape == (batch, seq, d_model)
    assert jnp.allclose(out, ref, atol=1e-4, rtol=1e-4), "mismatch vs reference"

    # Training mode (dropout on the sublayer output): exercise the path;
    # result is stochastic so just check shape / finiteness.
    out_tr = residual_connection(x, sublayer, gamma, beta,
                                 dropout_rate=0.1, training=True, rng_key=kd)
    out_tr = jax.block_until_ready(out_tr)
    assert out_tr.shape == (batch, seq, d_model)
    assert bool(jnp.all(jnp.isfinite(out_tr)))

    print("KERNEL_OK")
</pallas_src>

<mosaic_0001>
module attributes {stable_mosaic.version = 11 : i64} {
  func.func @_residual_layernorm_kernel(%arg0: i32, %arg1: memref<16x128xf32, #tpu.memory_space<vmem>>, %arg2: memref<16x128xf32, #tpu.memory_space<vmem>>, %arg3: memref<1x128xf32, #tpu.memory_space<vmem>>, %arg4: memref<1x128xf32, #tpu.memory_space<vmem>>, %arg5: memref<16x128xf32, #tpu.memory_space<vmem>>) attributes {dimension_semantics = [#tpu.dimension_semantics<parallel>], iteration_bounds = array<i64: 1>, scalar_prefetch = 0 : i64, scratch_operands = 0 : i64, tpu.core_type = #tpu.core_type<tc>, window_params = [{transform_indices = @transform_0, window_bounds = array<i64: 16, 128>}, {transform_indices = @transform_1, window_bounds = array<i64: 16, 128>}, {pipeline_mode = #tpu.pipeline_mode<synchronous>, transform_indices = @transform_2, window_bounds = array<i64: 1, 128>}, {pipeline_mode = #tpu.pipeline_mode<synchronous>, transform_indices = @transform_3, window_bounds = array<i64: 1, 128>}, {transform_indices = @transform_4, window_bounds = array<i64: 16, 128>}]} {
    %c0 = arith.constant 0 : index
    %c0_0 = arith.constant 0 : index
    %0 = vector.load %arg1[%c0, %c0_0] : memref<16x128xf32, #tpu.memory_space<vmem>>, vector<16x128xf32>
    %c0_1 = arith.constant 0 : index
    %c0_2 = arith.constant 0 : index
    %1 = vector.load %arg2[%c0_1, %c0_2] : memref<16x128xf32, #tpu.memory_space<vmem>>, vector<16x128xf32>
    %2 = arith.addf %0, %1 : vector<16x128xf32>
    %cst = arith.constant dense<0.000000e+00> : vector<16xf32>
    %3 = vector.multi_reduction <add>, %2, %cst [1] : vector<16x128xf32> to vector<16xf32>
    %4 = vector.shape_cast %3 : vector<16xf32> to vector<16x1xf32>
    %5 = arith.mulf %2, %2 : vector<16x128xf32>
    %cst_3 = arith.constant dense<0.000000e+00> : vector<16xf32>
    %6 = vector.multi_reduction <add>, %5, %cst_3 [1] : vector<16x128xf32> to vector<16xf32>
    %7 = vector.shape_cast %6 : vector<16xf32> to vector<16x1xf32>
    %cst_4 = arith.constant 3.125000e-02 : f32
    %8 = vector.broadcast %cst_4 : f32 to vector<16x1xf32>
    %9 = arith.mulf %4, %8 : vector<16x1xf32>
    %cst_5 = arith.constant 3.125000e-02 : f32
    %10 = vector.broadcast %cst_5 : f32 to vector<16x1xf32>
    %11 = arith.mulf %7, %10 : vector<16x1xf32>
    %12 = arith.mulf %9, %9 : vector<16x1xf32>
    %13 = arith.subf %11, %12 : vector<16x1xf32>
    %cst_6 = arith.constant 0.000000e+00 : f32
    %14 = vector.broadcast %cst_6 : f32 to vector<16x1xf32>
    %15 = arith.maximumf %13, %14 : vector<16x1xf32>
    %cst_7 = arith.constant 9.99999974E-6 : f32
    %16 = vector.broadcast %cst_7 : f32 to vector<16x1xf32>
    %17 = arith.addf %15, %16 : vector<16x1xf32>
    %18 = math.rsqrt %17 : vector<16x1xf32>
    %c0_8 = arith.constant 0 : index
    %c0_9 = arith.constant 0 : index
    %19 = vector.load %arg3[%c0_8, %c0_9] : memref<1x128xf32, #tpu.memory_space<vmem>>, vector<1x128xf32>
    %c0_10 = arith.constant 0 : index
    %c0_11 = arith.constant 0 : index
    %20 = vector.load %arg4[%c0_10, %c0_11] : memref<1x128xf32, #tpu.memory_space<vmem>>, vector<1x128xf32>
    %21 = vector.broadcast %9 : vector<16x1xf32> to vector<16x128xf32>
    %22 = arith.subf %2, %21 : vector<16x128xf32>
    %23 = vector.broadcast %19 : vector<1x128xf32> to vector<16x128xf32>
    %24 = vector.broadcast %18 : vector<16x1xf32> to vector<16x128xf32>
    %25 = arith.mulf %23, %24 : vector<16x128xf32>
    %26 = arith.mulf %22, %25 : vector<16x128xf32>
    %27 = vector.broadcast %20 : vector<1x128xf32> to vector<16x128xf32>
    %28 = arith.addf %26, %27 : vector<16x128xf32>
    %c0_12 = arith.constant 0 : index
    %c0_13 = arith.constant 0 : index
    %29 = vector.load %arg5[%c0_12, %c0_13] : memref<16x128xf32, #tpu.memory_space<vmem>>, vector<16x128xf32>
    tpu.vector_store %arg5[%c0_12, %c0_13], %28 {strides = array<i32>} : memref<16x128xf32, #tpu.memory_space<vmem>>, vector<16x128xf32>,
    return
  }
  func.func @transform_0(%arg0: i32) -> (i32, i32) {
    %c0_i32 = arith.constant 0 : i32
    %c0_i32_0 = arith.constant 0 : i32
    return %arg0, %c0_i32 : i32, i32
  }
  func.func @transform_1(%arg0: i32) -> (i32, i32) {
    %c0_i32 = arith.constant 0 : i32
    %c0_i32_0 = arith.constant 0 : i32
    return %arg0, %c0_i32 : i32, i32
  }
  func.func @transform_2(%arg0: i32) -> (i32, i32) {
    %c0_i32 = arith.constant 0 : i32
    %c0_i32_0 = arith.constant 0 : i32
    %c0_i32_1 = arith.constant 0 : i32
    return %c0_i32, %c0_i32_0 : i32, i32
  }
  func.func @transform_3(%arg0: i32) -> (i32, i32) {
    %c0_i32 = arith.constant 0 : i32
    %c0_i32_0 = arith.constant 0 : i32
    %c0_i32_1 = arith.constant 0 : i32
    return %c0_i32, %c0_i32_0 : i32, i32
  }
  func.func @transform_4(%arg0: i32) -> (i32, i32) {
    %c0_i32 = arith.constant 0 : i32
    %c0_i32_0 = arith.constant 0 : i32
    return %arg0, %c0_i32 : i32, i32
  }
}

</mosaic_0001>

<llo_original>
// kernel: tpu_custom_call.1
$region0: #{tpu_custom_call.1}
  #allocation0 [shape = 'u32[]', space=smem, size = 0x4, offset = 0x4, fixed_abs, tag = 'smem constant byte address 0x4 - core index']
  #allocation1 [shape = 'u32[144,128]{1,0:T(1,128)}', space=vmem, size = 0x12000, scoped, tag = 'internal scratch']
  %s0 = inlined_call_operand.hbm [shape: f32[16,128], index: 0, kind: input, shape index: {}]
  %s1 = inlined_call_operand.hbm [shape: f32[16,128], index: 1, kind: input, shape index: {}]
  %s2 = inlined_call_operand.vmem [shape: f32[1,128], index: 2, kind: input, shape index: {}]
  %s3 = inlined_call_operand.vmem [shape: f32[1,128], index: 3, kind: input, shape index: {}]
  %s4 = inlined_call_operand.hbm [shape: f32[16,128], index: 4, kind: output, shape index: {}]
  %s5 = sld [smem:[#allocation0]]
  $region34: #{tpu_custom_call.1} parent=0
    _
  %s7 = ssub.s32 1, %s5
  %s8 = scalar_select 0, %s7, %s5
  $region1: #{tpu_custom_call.1} parent=0
    #allocation2 [shape = 'u8[8192]{0}', space=vmem, size = 0x2000, scoped, tag = 'input window, operand 0, single buffered']
    #allocation3 [shape = 's32[1]{0}', space=sflag, size = 0x4, scoped, tag = 'scoped memory for tpu_custom_call.1']
    #allocation4 [shape = 's32[1]{0}', space=sflag, size = 0x4, scoped, tag = 'scoped memory for tpu_custom_call.1']
    #allocation5 [shape = 'u8[8192]{0}', space=vmem, size = 0x2000, scoped, tag = 'input window, operand 1, single buffered']
    #allocation6 [shape = 's32[1]{0}', space=sflag, size = 0x4, scoped, tag = 'scoped memory for tpu_custom_call.1']
    #allocation7 [shape = 'u8[8192]{0}', space=vmem, size = 0x2000, scoped, tag = 'output window, operand 0, single buffered']
    %9 = vsyncpa [#allocation3], 0
    %10 = vsyncpa [#allocation6], 0
    %11 = vsyncpa [#allocation4], 0
    // Predicated region
    $region2: #{tpu_custom_call.1} parent=1 // pred_check
      _
    $region3: #{tpu_custom_call.1} parent=1 // pred_check_branch
      %13 = sbr.rel (0) target = $region5
    $region4: #{tpu_custom_call.1} parent=1 // pred_region
      %s15 = ssub.s32 256, 256
      %16 = vsyncadd [#allocation3], %s15
      %s17 = sshll.u32 [#allocation2], 4
      %s18 = int_to_ptr.vmem [resolvable:$true] %s17
      %23 = dma.hbm_to_vmem [thread:$0]  %s0, 256, %s18, [#allocation3], 128, 128, 8
    $region5: #{tpu_custom_call.1} parent=1 // pred_fallthru
      _
    // Predicated region
    $region6: #{tpu_custom_call.1} parent=1 // pred_check
      _
    $region7: #{tpu_custom_call.1} parent=1 // pred_check_branch
      %25 = sbr.rel (0) target = $region9
    $region8: #{tpu_custom_call.1} parent=1 // pred_region
      %s27 = ssub.s32 256, 256
      %28 = vsyncadd [#allocation6], %s27
      %s29 = sshll.u32 [#allocation5], 4
      %s30 = int_to_ptr.vmem [resolvable:$true] %s29
      %35 = dma.hbm_to_vmem [thread:$0]  %s1, 256, %s30, [#allocation6], 128, 128, 8
    $region9: #{tpu_custom_call.1} parent=1 // pred_fallthru
      _
    // Predicated region
    $region10: #{tpu_custom_call.1} parent=1 // pred_check
      _
    $region11: #{tpu_custom_call.1} parent=1 // pred_check_branch
      %37 = sbr.rel (0) target = $region13
    $region12: #{tpu_custom_call.1} parent=1 // pred_region
      _
    $region13: #{tpu_custom_call.1} parent=1 // pred_fallthru
      _
    // Predicated region
    $region14: #{tpu_custom_call.1} parent=1 // pred_check
      _
    $region15: #{tpu_custom_call.1} parent=1 // pred_check_branch
      %39 = sbr.rel (0) target = $region17
    $region16: #{tpu_custom_call.1} parent=1 // pred_region
      _
    $region17: #{tpu_custom_call.1} parent=1 // pred_fallthru
      _
    // Predicated region
    $region18: #{tpu_custom_call.1} parent=1 // pred_check
      _
    $region19: #{tpu_custom_call.1} parent=1 // pred_check_branch
      %41 = sbr.rel (0) target = $region21
    $region20: #{tpu_custom_call.1} parent=1 // pred_region
      %42 = dma.done [#allocation3], 256
    $region21: #{tpu_custom_call.1} parent=1 // pred_fallthru
      _
    // Predicated region
    $region22: #{tpu_custom_call.1} parent=1 // pred_check
      _
    $region23: #{tpu_custom_call.1} parent=1 // pred_check_branch
      %44 = sbr.rel (0) target = $region25
    $region24: #{tpu_custom_call.1} parent=1 // pred_region
      %45 = dma.done [#allocation6], 256
    $region25: #{tpu_custom_call.1} parent=1 // pred_fallthru
      _
    %v46 = vld [vmem:[#allocation2] sm:$0xff]
    %v47 = vld [vmem:[#allocation2 + $0x8] sm:$0xff]
    %v48 = vld [vmem:[#allocation5] sm:$0xff]
    %v49 = vld [vmem:[#allocation5 + $0x8] sm:$0xff]
    %v50 = vadd.f32 %v46, %v48
    %v51 = vadd.f32 %v47, %v49
    %52 = vadd.xlane.f32.xlu0 %v50
    %v53 = vpop.xlane.xlu0 %52
    %54 = vadd.xlane.f32.xlu0 %v51
    %v55 = vpop.xlane.xlu0 %54
    %v56 = vmul.f32 %v50, %v50
    %v57 = vmul.f32 %v51, %v51
    %58 = vadd.xlane.f32.xlu0 %v56
    %v59 = vpop.xlane.xlu0 %58
    %60 = vadd.xlane.f32.xlu0 %v57
    %v61 = vpop.xlane.xlu0 %60
    %v62 = vmul.f32 %v53, 0.03125
    %v63 = vmul.f32 %v55, 0.03125
    %v64 = vmul.f32 %v59, 0.03125
    %v65 = vmul.f32 %v61, 0.03125
    %v66 = vmul.f32 %v62, %v62
    %v67 = vmul.f32 %v63, %v63
    %v68 = vsub.f32 %v64, %v66
    %v69 = vsub.f32 %v65, %v67
    %v70 = vmax.f32 %v68, 0.0
    %v71 = vmax.f32 %v69, 0.0
    %v72 = vadd.f32 %v70, 1e-05
    %v73 = vadd.f32 %v71, 1e-05
    %v74 = vrsqrt.pop %v72
    %v75 = vrsqrt.pop %v73
    %v76 = vld [vmem:[%s2] sm:$0x1]
    %v77 = vld [vmem:[%s3] sm:$0x1]
    %v78 = vsub.f32 %v50, %v62
    %v79 = vsub.f32 %v51, %v63
    %v81 = vlaneseq
    %v82 = vshrl.u32 %v81, 7
    %v83 = vsub.s32 0, %v82
    %v84 = vrot.slane %v76, %v83
    %v86 = vmul.f32 %v84, %v74
    %v87 = vmul.f32 %v84, %v75
    %v88 = vmul.f32 %v78, %v86
    %v89 = vmul.f32 %v79, %v87
    %v91 = vlaneseq
    %v92 = vshrl.u32 %v91, 7
    %v93 = vsub.s32 0, %v92
    %v94 = vrot.slane %v77, %v93
    %v96 = vadd.f32 %v88, %v94
    %v97 = vadd.f32 %v89, %v94
    %98 = vst [vmem:[#allocation7] sm:$0xff] %v96
    %99 = vst [vmem:[#allocation7 + $0x8] sm:$0xff] %v97
    // Predicated region
    $region26: #{tpu_custom_call.1} parent=1 // pred_check
      _
    $region27: #{tpu_custom_call.1} parent=1 // pred_check_branch
      %101 = sbr.rel (0) target = $region29
    $region28: #{tpu_custom_call.1} parent=1 // pred_region
      %s103 = ssub.s32 256, 256
      %104 = vsyncadd [#allocation4], %s103
      %s105 = sshll.u32 [#allocation7], 4
      %s106 = int_to_ptr.vmem [resolvable:$true] %s105
      %111 = dma.vmem_to_hbm [thread:$0]  %s106, 256, %s4, [#allocation4], 128, 128, 8
    $region29: #{tpu_custom_call.1} parent=1 // pred_fallthru
      _
    // Predicated region
    $region30: #{tpu_custom_call.1} parent=1 // pred_check
      _
    $region31: #{tpu_custom_call.1} parent=1 // pred_check_branch
      %113 = sbr.rel (0) target = $region33
    $region32: #{tpu_custom_call.1} parent=1 // pred_region
      %114 = dma.done [#allocation4], 256
    $region33: #{tpu_custom_call.1} parent=1 // pred_fallthru
      _
    %115 = vsyncpa [#allocation3], 1
    %116 = vsyncpa [#allocation6], 1
    %117 = vsyncpa [#allocation4], 1

</llo_original>
